<compile_context>
chip_gen: v7x
topology: tpu7x:2x2x1
jax: 0.10.0
libtpu: 0.0.40
codegen_flags: <defaults>
</compile_context>

<pallas_src>
import jax
import jax.numpy as jnp
from jax.experimental import pallas as pl
from jax.experimental.pallas import tpu as pltpu

IN_FEATURES = 64
OUT_FEATURES = 128
TM_MAX = 2048  # rows per grid step (multiple of 8; ~3 MiB double-buffered f32)


def linear_kernel(x_ref, w_ref, b_ref, o_ref):
    # x_ref: (TM, 64), w_ref: (64, 128), b_ref: (1, 128), o_ref: (TM, 128)
    acc = jnp.dot(x_ref[...], w_ref[...], preferred_element_type=jnp.float32)
    o_ref[...] = (acc + b_ref[...]).astype(o_ref.dtype)


def prepare_params(weight, bias):
    """One-time torch->kernel layout conversion.

    weight: (128, 64) torch convention  ->  (64, 128)
    bias:   (128,)                      ->  (1, 128) for lane broadcast
    """
    return weight.T, bias.reshape(1, OUT_FEATURES)


def my_linear(act, w_t, b2d):
    """act: (..., 64); w_t: (64, 128); b2d: (1, 128). Returns (..., 128)."""
    orig_shape = act.shape
    x = act.reshape(-1, IN_FEATURES)  # (M, 64)
    m = x.shape[0]

    # Row tile: as large as possible up to TM_MAX, rounded to a multiple of 8
    # sublanes. The last (ragged) tile is handled by Pallas output masking.
    tm = min(m, TM_MAX)
    tm = ((tm + 7) // 8) * 8
    grid = (pl.cdiv(m, tm),)

    out = pl.pallas_call(
        linear_kernel,
        out_shape=jax.ShapeDtypeStruct((m, OUT_FEATURES), act.dtype),
        grid_spec=pltpu.PrefetchScalarGridSpec(
            num_scalar_prefetch=0,
            grid=grid,
            in_specs=[
                # Streamed activation tile.
                pl.BlockSpec((tm, IN_FEATURES), lambda i: (i, 0)),
                # Weight and bias: VMEM-resident across all grid steps.
                pl.BlockSpec((IN_FEATURES, OUT_FEATURES), lambda i: (0, 0)),
                pl.BlockSpec((1, OUT_FEATURES), lambda i: (0, 0)),
            ],
            out_specs=pl.BlockSpec((tm, OUT_FEATURES), lambda i: (i, 0)),
        ),
        compiler_params=pltpu.CompilerParams(
            dimension_semantics=("parallel",)),
    )(x, w_t, b2d)

    return out.reshape(*orig_shape[:-1], OUT_FEATURES)


if __name__ == "__main__":
    key = jax.random.PRNGKey(0)
    k_act, k_w, k_b = jax.random.split(key, 3)

    # Small shapes consistent with the module: (batch=2, seq=8, hidden=64).
    act = jax.random.normal(k_act, (2, 8, IN_FEATURES), dtype=jnp.float32)

    # Deterministic parameter init (torch.nn.Linear-style uniform bound).
    bound = 1.0 / (IN_FEATURES ** 0.5)
    weight = jax.random.uniform(
        k_w, (OUT_FEATURES, IN_FEATURES), dtype=jnp.float32,
        minval=-bound, maxval=bound)
    bias = jax.random.uniform(
        k_b, (OUT_FEATURES,), dtype=jnp.float32, minval=-bound, maxval=bound)

    # One-time layout conversion (kept out of the per-call path).
    w_t, b2d = prepare_params(weight, bias)

    # Small-shape run (single grid step).
    out = my_linear(act, w_t, b2d)
    jax.block_until_ready(out)
    ref = act @ weight.T + bias
    assert out.shape == (2, 8, OUT_FEATURES)
    assert jnp.allclose(out, ref, atol=1e-5, rtol=1e-5)

    # Larger run to exercise multi-step tiling + ragged last tile.
    act_big = jax.random.normal(k_act, (4, 1000, IN_FEATURES), dtype=jnp.float32)
    out_big = my_linear(act_big, w_t, b2d)
    jax.block_until_ready(out_big)
    ref_big = act_big @ weight.T + bias
    assert out_big.shape == (4, 1000, OUT_FEATURES)
    assert jnp.allclose(out_big, ref_big, atol=1e-5, rtol=1e-5)

    print("KERNEL_OK")
</pallas_src>

<mosaic_0001>
module attributes {stable_mosaic.version = 11 : i64} {
  func.func @linear_kernel(%arg0: i32, %arg1: memref<16x64xf32, #tpu.memory_space<vmem>>, %arg2: memref<64x128xf32, #tpu.memory_space<vmem>>, %arg3: memref<1x128xf32, #tpu.memory_space<vmem>>, %arg4: memref<16x128xf32, #tpu.memory_space<vmem>>) attributes {dimension_semantics = [#tpu.dimension_semantics<parallel>], iteration_bounds = array<i64: 1>, scalar_prefetch = 0 : i64, scratch_operands = 0 : i64, tpu.core_type = #tpu.core_type<tc>, window_params = [{transform_indices = @transform_0, window_bounds = array<i64: 16, 64>}, {pipeline_mode = #tpu.pipeline_mode<synchronous>, transform_indices = @transform_1, window_bounds = array<i64: 64, 128>}, {pipeline_mode = #tpu.pipeline_mode<synchronous>, transform_indices = @transform_2, window_bounds = array<i64: 1, 128>}, {transform_indices = @transform_3, window_bounds = array<i64: 16, 128>}]} {
    %c0 = arith.constant 0 : index
    %c0_0 = arith.constant 0 : index
    %0 = vector.load %arg1[%c0, %c0_0] : memref<16x64xf32, #tpu.memory_space<vmem>>, vector<16x64xf32>
    %c0_1 = arith.constant 0 : index
    %c0_2 = arith.constant 0 : index
    %1 = vector.load %arg2[%c0_1, %c0_2] : memref<64x128xf32, #tpu.memory_space<vmem>>, vector<64x128xf32>
    %cst = arith.constant dense<0.000000e+00> : vector<16x128xf32>
    %2 = tpu.matmul %0, %1, %cst {dimension_numbers = #tpu.dot_dimension_numbers<[1], [0], [0], [1], [0, 0, 1, 1], [], []>} : vector<16x64xf32>, vector<64x128xf32>, vector<16x128xf32> -> vector<16x128xf32>
    %c0_3 = arith.constant 0 : index
    %c0_4 = arith.constant 0 : index
    %3 = vector.load %arg3[%c0_3, %c0_4] : memref<1x128xf32, #tpu.memory_space<vmem>>, vector<1x128xf32>
    %4 = vector.broadcast %3 : vector<1x128xf32> to vector<16x128xf32>
    %5 = arith.addf %2, %4 : vector<16x128xf32>
    %c0_5 = arith.constant 0 : index
    %c0_6 = arith.constant 0 : index
    %6 = vector.load %arg4[%c0_5, %c0_6] : memref<16x128xf32, #tpu.memory_space<vmem>>, vector<16x128xf32>
    tpu.vector_store %arg4[%c0_5, %c0_6], %5 {strides = array<i32>} : memref<16x128xf32, #tpu.memory_space<vmem>>, vector<16x128xf32>,
    return
  }
  func.func @transform_0(%arg0: i32) -> (i32, i32) {
    %c0_i32 = arith.constant 0 : i32
    %c0_i32_0 = arith.constant 0 : i32
    return %arg0, %c0_i32 : i32, i32
  }
  func.func @transform_1(%arg0: i32) -> (i32, i32) {
    %c0_i32 = arith.constant 0 : i32
    %c0_i32_0 = arith.constant 0 : i32
    %c0_i32_1 = arith.constant 0 : i32
    return %c0_i32, %c0_i32_0 : i32, i32
  }
  func.func @transform_2(%arg0: i32) -> (i32, i32) {
    %c0_i32 = arith.constant 0 : i32
    %c0_i32_0 = arith.constant 0 : i32
    %c0_i32_1 = arith.constant 0 : i32
    return %c0_i32, %c0_i32_0 : i32, i32
  }
  func.func @transform_3(%arg0: i32) -> (i32, i32) {
    %c0_i32 = arith.constant 0 : i32
    %c0_i32_0 = arith.constant 0 : i32
    return %arg0, %c0_i32 : i32, i32
  }
}

</mosaic_0001>

<llo_original>
// kernel: tpu_custom_call.1
$region0: #{tpu_custom_call.1}
  #allocation0 [shape = 'u32[]', space=smem, size = 0x4, offset = 0x4, fixed_abs, tag = 'smem constant byte address 0x4 - core index']
  #allocation1 [shape = 'u32[144,128]{1,0:T(1,128)}', space=vmem, size = 0x12000, scoped, tag = 'internal scratch']
  %s0 = inlined_call_operand.hbm [shape: f32[16,64], index: 0, kind: input, shape index: {}]
  %s1 = inlined_call_operand.hbm [shape: f32[64,128], index: 1, kind: input, shape index: {}]
  %s2 = inlined_call_operand.vmem [shape: f32[1,128], index: 2, kind: input, shape index: {}]
  %s3 = inlined_call_operand.hbm [shape: f32[16,128], index: 3, kind: output, shape index: {}]
  %s4 = sld [smem:[#allocation0]]
  $region30: #{tpu_custom_call.1} parent=0
    _
  %s6 = ssub.s32 1, %s4
  %s7 = scalar_select 0, %s6, %s4
  $region1: #{tpu_custom_call.1} parent=0
    #allocation2 [shape = 'u8[8192]{0}', space=vmem, size = 0x2000, scoped, tag = 'input window, operand 0, single buffered']
    #allocation3 [shape = 's32[1]{0}', space=sflag, size = 0x4, scoped, tag = 'scoped memory for tpu_custom_call.1']
    #allocation4 [shape = 's32[1]{0}', space=sflag, size = 0x4, scoped, tag = 'scoped memory for tpu_custom_call.1']
    #allocation5 [shape = 'u8[32768]{0}', space=vmem, size = 0x8000, scoped, tag = 'input window, operand 1, single buffered']
    #allocation6 [shape = 's32[1]{0}', space=sflag, size = 0x4, scoped, tag = 'scoped memory for tpu_custom_call.1']
    #allocation7 [shape = 'u8[8192]{0}', space=vmem, size = 0x2000, scoped, tag = 'output window, operand 0, single buffered']
    %8 = vsyncpa [#allocation3], 0
    %9 = vsyncpa [#allocation6], 0
    %10 = vsyncpa [#allocation4], 0
    // Predicated region
    $region2: #{tpu_custom_call.1} parent=1 // pred_check
      _
    $region3: #{tpu_custom_call.1} parent=1 // pred_check_branch
      %12 = sbr.rel (0) target = $region5
    $region4: #{tpu_custom_call.1} parent=1 // pred_region
      %s14 = ssub.s32 256, 256
      %15 = vsyncadd [#allocation3], %s14
      %s16 = sshll.u32 [#allocation2], 4
      %s17 = int_to_ptr.vmem [resolvable:$true] %s16
      %22 = dma.hbm_to_vmem [thread:$0]  %s0, 256, %s17, [#allocation3], 128, 128, 8
    $region5: #{tpu_custom_call.1} parent=1 // pred_fallthru
      _
    // Predicated region
    $region6: #{tpu_custom_call.1} parent=1 // pred_check
      _
    $region7: #{tpu_custom_call.1} parent=1 // pred_check_branch
      %24 = sbr.rel (0) target = $region9
    $region8: #{tpu_custom_call.1} parent=1 // pred_region
      %s26 = ssub.s32 1024, 1024
      %27 = vsyncadd [#allocation6], %s26
      %s28 = sshll.u32 [#allocation5], 4
      %s29 = int_to_ptr.vmem [resolvable:$true] %s28
      %34 = dma.hbm_to_vmem [thread:$0]  %s1, 1024, %s29, [#allocation6], 128, 128, 8
    $region9: #{tpu_custom_call.1} parent=1 // pred_fallthru
      _
    // Predicated region
    $region10: #{tpu_custom_call.1} parent=1 // pred_check
      _
    $region11: #{tpu_custom_call.1} parent=1 // pred_check_branch
      %36 = sbr.rel (0) target = $region13
    $region12: #{tpu_custom_call.1} parent=1 // pred_region
      _
    $region13: #{tpu_custom_call.1} parent=1 // pred_fallthru
      _
    // Predicated region
    $region14: #{tpu_custom_call.1} parent=1 // pred_check
      _
    $region15: #{tpu_custom_call.1} parent=1 // pred_check_branch
      %38 = sbr.rel (0) target = $region17
    $region16: #{tpu_custom_call.1} parent=1 // pred_region
      %39 = dma.done [#allocation3], 256
    $region17: #{tpu_custom_call.1} parent=1 // pred_fallthru
      _
    // Predicated region
    $region18: #{tpu_custom_call.1} parent=1 // pred_check
      _
    $region19: #{tpu_custom_call.1} parent=1 // pred_check_branch
      %41 = sbr.rel (0) target = $region21
    $region20: #{tpu_custom_call.1} parent=1 // pred_region
      %42 = dma.done [#allocation6], 1024
    $region21: #{tpu_custom_call.1} parent=1 // pred_fallthru
      _
    %v43 = vld [vmem:[#allocation2] sm:$0xff]
    %v44 = vld [vmem:[#allocation2 + $0x8] sm:$0xff]
    %v45 = vld [vmem:[#allocation5] sm:$0xff]
    %v46 = vld [vmem:[#allocation5 + $0x8] sm:$0xff]
    %v47 = vld [vmem:[#allocation5 + $0x10] sm:$0xff]
    %v48 = vld [vmem:[#allocation5 + $0x18] sm:$0xff]
    %v49 = vld [vmem:[#allocation5 + $0x20] sm:$0xff]
    %v50 = vld [vmem:[#allocation5 + $0x28] sm:$0xff]
    %v51 = vld [vmem:[#allocation5 + $0x30] sm:$0xff]
    %v52 = vld [vmem:[#allocation5 + $0x38] sm:$0xff]
    %v53 = vld [vmem:[%s2] sm:$0x1]
    %v55 = vlaneseq
    %v56 = vshrl.u32 %v55, 7
    %v57 = vsub.s32 0, %v56
    %v58 = vrot.slane %v53, %v57
    %vm60 = vcmask 523264
    %v62 = vsel %vm60, %v43, 0
    %v65 = vsel %vm60, %v44, 0
    %67 = vmatprep.subr.mxu0 0.0
    %68 = vmatpush1.msra.mxu0 %v45
    %69 = vmatprep.subr.mxu0 0.0
    %70 = vmatpush1.msra.mxu0 %v46
    %71 = vmatprep.subr.mxu0 0.0
    %72 = vmatpush1.msra.mxu0 %v47
    %73 = vmatprep.subr.mxu0 0.0
    %74 = vmatpush1.msra.mxu0 %v48
    %75 = vmatprep.subr.mxu0 0.0
    %76 = vmatpush1.msra.mxu0 %v49
    %77 = vmatprep.subr.mxu0 0.0
    %78 = vmatpush1.msra.mxu0 %v50
    %79 = vmatprep.subr.mxu0 0.0
    %80 = vmatpush1.msra.mxu0 %v51
    %81 = vmatprep.subr.mxu0 0.0
    %82 = vmatpush1.msra.mxu0 %v52
    %83 = vmatprep.subr.mxu0 0.0
    %84 = vmatpush1.msra.mxu0 0.0
    %85 = vmatprep.subr.mxu0 0.0
    %86 = vmatpush1.msra.mxu0 0.0
    %87 = vmatprep.subr.mxu0 0.0
    %88 = vmatpush1.msra.mxu0 0.0
    %89 = vmatprep.subr.mxu0 0.0
    %90 = vmatpush1.msra.mxu0 0.0
    %91 = vmatprep.subr.mxu0 0.0
    %92 = vmatpush1.msra.mxu0 0.0
    %93 = vmatprep.subr.mxu0 0.0
    %94 = vmatpush1.msra.mxu0 0.0
    %95 = vmatprep.subr.mxu0 0.0
    %96 = vmatpush1.msra.mxu0 0.0
    %97 = vmatprep.subr.mxu0 0.0
    %98 = vmatpush1.msra.mxu0 0.0
    %99 = vmatprep.subr.mxu0 0.0
    %100 = vmatpush1.msra.mxu0 0.0
    %101 = vmatprep.subr.mxu0 0.0
    %102 = vmatpush1.msra.mxu0 0.0
    %103 = vmatprep.subr.mxu0 0.0
    %104 = vmatpush1.msra.mxu0 0.0
    %105 = vmatprep.subr.mxu0 0.0
    %106 = vmatpush1.msra.mxu0 0.0
    %107 = vmatprep.subr.mxu0 0.0
    %108 = vmatpush1.msra.mxu0 0.0
    %109 = vmatprep.subr.mxu0 0.0
    %110 = vmatpush1.msra.mxu0 0.0
    %111 = vmatprep.subr.mxu0 0.0
    %112 = vmatpush1.msra.mxu0 0.0
    %113 = vmatprep.subr.mxu0 0.0
    %114 = vmatpush1.msra.mxu0 0.0
    %115 = vmatprep.subr.mxu0 0.0
    %116 = vmatpush1.msra.mxu0 0.0
    %117 = vmatprep.subr.mxu0 0.0
    %118 = vmatpush1.msra.mxu0 0.0
    %119 = vmatprep.subr.mxu0 0.0
    %120 = vmatpush1.msra.mxu0 0.0
    %121 = vmatprep.subr.mxu0 0.0
    %122 = vmatpush1.msra.mxu0 0.0
    %123 = vmatprep.subr.mxu0 0.0
    %124 = vmatpush1.msra.mxu0 0.0
    %125 = vmatprep.subr.mxu0 0.0
    %126 = vmatpush1.msra.mxu0 0.0
    %127 = vmatprep.subr.mxu0 0.0
    %128 = vmatpush1.msra.mxu0 0.0
    %129 = vmatprep.subr.mxu0 0.0
    %130 = vmatpush1.msra.mxu0 0.0
    %131 = vmatprep.mubr.f32.mxu0 0.0
    %132 = vmatmul.mubr.f32.gmra.mrb[0].mxu0 %v62
    %v133 = vpop.f32.mrb[0].mxu0
    %v134 = vadd.f32 %v58, %v133
    %v135 = vpop.f32.mrb[0].mxu0
    %136 = vmatprep.mubr.f32.mxu0 0.0
    %137 = vmatmul.mubr.f32.gmra.mrb[0].mxu0 %v65
    %v138 = vpop.f32.mrb[0].mxu0
    %v139 = vadd.f32 %v58, %v138
    %v140 = vpop.f32.mrb[0].mxu0
    %141 = vdwg.mxu0
    %142 = vst [vmem:[#allocation7] sm:$0xff] %v134
    %143 = vst [vmem:[#allocation7 + $0x8] sm:$0xff] %v139
    // Predicated region
    $region22: #{tpu_custom_call.1} parent=1 // pred_check
      _
    $region23: #{tpu_custom_call.1} parent=1 // pred_check_branch
      %145 = sbr.rel (0) target = $region25
    $region24: #{tpu_custom_call.1} parent=1 // pred_region
      %s147 = ssub.s32 256, 256
      %148 = vsyncadd [#allocation4], %s147
      %s149 = sshll.u32 [#allocation7], 4
      %s150 = int_to_ptr.vmem [resolvable:$true] %s149
      %155 = dma.vmem_to_hbm [thread:$0]  %s150, 256, %s3, [#allocation4], 128, 128, 8
    $region25: #{tpu_custom_call.1} parent=1 // pred_fallthru
      _
    // Predicated region
    $region26: #{tpu_custom_call.1} parent=1 // pred_check
      _
    $region27: #{tpu_custom_call.1} parent=1 // pred_check_branch
      %157 = sbr.rel (0) target = $region29
    $region28: #{tpu_custom_call.1} parent=1 // pred_region
      %158 = dma.done [#allocation4], 256
    $region29: #{tpu_custom_call.1} parent=1 // pred_fallthru
      _
    %159 = vsyncpa [#allocation3], 1
    %160 = vsyncpa [#allocation6], 1
    %161 = vsyncpa [#allocation4], 1

</llo_original>
